<compile_context>
chip_gen: v6e
topology: v6e:2x2x1
jax: 0.10.0
libtpu: 0.0.40
codegen_flags: <defaults>
</compile_context>

<pallas_src>
import jax
import jax.numpy as jnp
from jax.experimental import pallas as pl
from jax.experimental.pallas import tpu as pltpu


def critic_kernel(x_ref, w1_ref, b1_ref, w2_ref, b2_ref,
                  w3_ref, b3_ref, w4_ref, b4_ref, out_ref):
    # Layer 1: Linear(total_obs_dim -> hidden) + ReLU   (MXU, bf16 in / f32 acc)
    h = jnp.dot(x_ref[...].astype(jnp.bfloat16), w1_ref[...],
                preferred_element_type=jnp.float32)
    h = jnp.maximum(h + b1_ref[...], 0.0)
    # Layer 2: Linear(hidden -> hidden) + ReLU
    h = jnp.dot(h.astype(jnp.bfloat16), w2_ref[...],
                preferred_element_type=jnp.float32)
    h = jnp.maximum(h + b2_ref[...], 0.0)
    # Layer 3: Linear(hidden -> hidden // 2) + ReLU
    h = jnp.dot(h.astype(jnp.bfloat16), w3_ref[...],
                preferred_element_type=jnp.float32)
    h = jnp.maximum(h + b3_ref[...], 0.0)
    # Layer 4 (value head, hidden//2 -> 1): VPU multiply + lane reduction
    # instead of a wasteful 1-column MXU matmul. w4 is a (1, hidden//2) row.
    w4_row = w4_ref[...].astype(jnp.float32)
    v = jnp.sum(h * w4_row, axis=-1, keepdims=True) + b4_ref[...]
    out_ref[...] = v.astype(out_ref.dtype)


def centralized_critic_forward(global_obs, params, *,
                               tile_m=None,
                               vmem_limit_bytes=32 * 1024 * 1024):
    """params = (w1, b1, w2, b2, w3, b3, w4_row, b4).

    Weights are (in, out) bf16; biases are (1, out) f32; w4_row is (1, hidden//2).
    """
    w1, b1, w2, b2, w3, b3, w4, b4 = params
    B, obs_dim = global_obs.shape
    hidden = w1.shape[1]
    half = w3.shape[1]

    if tile_m is None:
        # 128-row tiles saturate the v5e MXU and are multiples of 8 for the
        # sublane rule; don't pad tiny batches all the way out to 128.
        tile_m = min(128, max(8, ((B + 7) // 8) * 8))
    padded_b = ((B + tile_m - 1) // tile_m) * tile_m
    if padded_b != B:
        global_obs = jnp.pad(global_obs, ((0, padded_b - B), (0, 0)))

    grid = (padded_b // tile_m,)

    flops = 2 * padded_b * (obs_dim * hidden + hidden * hidden
                            + hidden * half + half)
    bytes_accessed = int(
        global_obs.size * global_obs.dtype.itemsize
        + sum(int(p.size) * p.dtype.itemsize for p in params)
        + padded_b * 4)

    def resident(shape):
        # Same block every grid step -> stays pinned in VMEM across the grid.
        return pl.BlockSpec(shape, lambda i: (0, 0))

    out = pl.pallas_call(
        critic_kernel,
        out_shape=jax.ShapeDtypeStruct((padded_b, 1), jnp.float32),
        grid=grid,
        in_specs=[
            pl.BlockSpec((tile_m, obs_dim), lambda i: (i, 0)),   # x streams
            resident(w1.shape), resident(b1.shape),
            resident(w2.shape), resident(b2.shape),
            resident(w3.shape), resident(b3.shape),
            resident(w4.shape), resident(b4.shape),
        ],
        out_specs=pl.BlockSpec((tile_m, 1), lambda i: (i, 0)),
        compiler_params=pltpu.CompilerParams(
            dimension_semantics=("parallel",),
            vmem_limit_bytes=vmem_limit_bytes),
        cost_estimate=pl.CostEstimate(
            flops=flops, transcendentals=0, bytes_accessed=bytes_accessed),
    )(global_obs, w1, b1, w2, b2, w3, b3, w4, b4)
    return out[:B]


def init_critic_params(key, total_obs_dim, hidden_dim=512):
    """PyTorch-style uniform init. Weights (in, out) bf16, biases (1, out) f32.

    The value-head weight is stored as a (1, hidden//2) row for the VPU path.
    """
    dims = [(total_obs_dim, hidden_dim),
            (hidden_dim, hidden_dim),
            (hidden_dim, hidden_dim // 2),
            (hidden_dim // 2, 1)]
    params = []
    for li, (fan_in, fan_out) in enumerate(dims):
        key, kw, kb = jax.random.split(key, 3)
        bound = 1.0 / jnp.sqrt(jnp.float32(fan_in))
        w = jax.random.uniform(kw, (fan_in, fan_out), jnp.float32, -bound, bound)
        b = jax.random.uniform(kb, (1, fan_out), jnp.float32, -bound, bound)
        if li == len(dims) - 1:
            w = w.T                      # (1, hidden//2) row for VPU reduce
        params += [w.astype(jnp.bfloat16), b]
    return tuple(params)


def reference_forward(x, params):
    """Pure-JAX reference mirroring the kernel's bf16-in / f32-accumulate math."""
    w1, b1, w2, b2, w3, b3, w4_row, b4 = params
    f32 = jnp.float32
    h = jnp.maximum(jnp.dot(x.astype(jnp.bfloat16), w1,
                            preferred_element_type=f32) + b1, 0.0)
    h = jnp.maximum(jnp.dot(h.astype(jnp.bfloat16), w2,
                            preferred_element_type=f32) + b2, 0.0)
    h = jnp.maximum(jnp.dot(h.astype(jnp.bfloat16), w3,
                            preferred_element_type=f32) + b3, 0.0)
    return jnp.sum(h * w4_row.astype(f32), axis=-1, keepdims=True) + b4


if __name__ == "__main__":
    key = jax.random.PRNGKey(0)
    total_obs_dim = 32   # concatenated observations from all agents
    hidden_dim = 64      # small stand-in for the default 512

    key, kp = jax.random.split(key)
    params = init_critic_params(kp, total_obs_dim, hidden_dim)

    # Case 1: small batch, single grid step.
    key, kx = jax.random.split(key)
    obs_small = jax.random.normal(kx, (8, total_obs_dim), jnp.float32)
    val_small = jax.block_until_ready(
        centralized_critic_forward(obs_small, params))
    ref_small = reference_forward(obs_small, params)
    assert val_small.shape == (8, 1)
    assert jnp.allclose(val_small, ref_small, atol=1e-3, rtol=1e-3)

    # Case 2: batch that needs padding + a multi-step (pipelined) grid.
    key, kx = jax.random.split(key)
    obs_big = jax.random.normal(kx, (20, total_obs_dim), jnp.float32)
    val_big = jax.block_until_ready(
        centralized_critic_forward(obs_big, params, tile_m=8))
    ref_big = reference_forward(obs_big, params)
    assert val_big.shape == (20, 1)
    assert jnp.allclose(val_big, ref_big, atol=1e-3, rtol=1e-3)

    # TODO(synk): cross-call weight prefetch (P10) for tiny-batch inference is
    # a call-site restructuring, not expressible inside this single kernel.
    print("KERNEL_OK")
</pallas_src>

<mosaic_0001>
module attributes {stable_mosaic.version = 11 : i64} {
  func.func @critic_kernel(%arg0: i32, %arg1: memref<8x32xf32, #tpu.memory_space<vmem>>, %arg2: memref<32x64xbf16, #tpu.memory_space<vmem>>, %arg3: memref<1x64xf32, #tpu.memory_space<vmem>>, %arg4: memref<64x64xbf16, #tpu.memory_space<vmem>>, %arg5: memref<1x64xf32, #tpu.memory_space<vmem>>, %arg6: memref<64x32xbf16, #tpu.memory_space<vmem>>, %arg7: memref<1x32xf32, #tpu.memory_space<vmem>>, %arg8: memref<1x32xbf16, #tpu.memory_space<vmem>>, %arg9: memref<1x1xf32, #tpu.memory_space<vmem>>, %arg10: memref<8x1xf32, #tpu.memory_space<vmem>>) attributes {dimension_semantics = [#tpu.dimension_semantics<parallel>], iteration_bounds = array<i64: 1>, scalar_prefetch = 0 : i64, scratch_operands = 0 : i64, tpu.core_type = #tpu.core_type<tc>, window_params = [{transform_indices = @transform_0, window_bounds = array<i64: 8, 32>}, {pipeline_mode = #tpu.pipeline_mode<synchronous>, transform_indices = @transform_1, window_bounds = array<i64: 32, 64>}, {pipeline_mode = #tpu.pipeline_mode<synchronous>, transform_indices = @transform_2, window_bounds = array<i64: 1, 64>}, {pipeline_mode = #tpu.pipeline_mode<synchronous>, transform_indices = @transform_3, window_bounds = array<i64: 64, 64>}, {pipeline_mode = #tpu.pipeline_mode<synchronous>, transform_indices = @transform_4, window_bounds = array<i64: 1, 64>}, {pipeline_mode = #tpu.pipeline_mode<synchronous>, transform_indices = @transform_5, window_bounds = array<i64: 64, 32>}, {pipeline_mode = #tpu.pipeline_mode<synchronous>, transform_indices = @transform_6, window_bounds = array<i64: 1, 32>}, {pipeline_mode = #tpu.pipeline_mode<synchronous>, transform_indices = @transform_7, window_bounds = array<i64: 1, 32>}, {pipeline_mode = #tpu.pipeline_mode<synchronous>, transform_indices = @transform_8, window_bounds = array<i64: 1, 1>}, {transform_indices = @transform_9, window_bounds = array<i64: 8, 1>}]} {
    %c0 = arith.constant 0 : index
    %c0_0 = arith.constant 0 : index
    %0 = vector.load %arg1[%c0, %c0_0] : memref<8x32xf32, #tpu.memory_space<vmem>>, vector<8x32xf32>
    %1 = arith.truncf %0 : vector<8x32xf32> to vector<8x32xbf16>
    %c0_1 = arith.constant 0 : index
    %c0_2 = arith.constant 0 : index
    %2 = vector.load %arg2[%c0_1, %c0_2] : memref<32x64xbf16, #tpu.memory_space<vmem>>, vector<32x64xbf16>
    %cst = arith.constant dense<0.000000e+00> : vector<8x64xf32>
    %3 = tpu.matmul %1, %2, %cst {dimension_numbers = #tpu.dot_dimension_numbers<[1], [0], [0], [1], [0, 0, 1, 1], [], []>} : vector<8x32xbf16>, vector<32x64xbf16>, vector<8x64xf32> -> vector<8x64xf32>
    %c0_3 = arith.constant 0 : index
    %c0_4 = arith.constant 0 : index
    %4 = vector.load %arg3[%c0_3, %c0_4] : memref<1x64xf32, #tpu.memory_space<vmem>>, vector<1x64xf32>
    %5 = vector.broadcast %4 : vector<1x64xf32> to vector<8x64xf32>
    %6 = arith.addf %3, %5 : vector<8x64xf32>
    %cst_5 = arith.constant 0.000000e+00 : f32
    %7 = vector.broadcast %cst_5 : f32 to vector<8x64xf32>
    %8 = arith.maximumf %6, %7 : vector<8x64xf32>
    %9 = arith.truncf %8 : vector<8x64xf32> to vector<8x64xbf16>
    %c0_6 = arith.constant 0 : index
    %c0_7 = arith.constant 0 : index
    %10 = vector.load %arg4[%c0_6, %c0_7] : memref<64x64xbf16, #tpu.memory_space<vmem>>, vector<64x64xbf16>
    %cst_8 = arith.constant dense<0.000000e+00> : vector<8x64xf32>
    %11 = tpu.matmul %9, %10, %cst_8 {dimension_numbers = #tpu.dot_dimension_numbers<[1], [0], [0], [1], [0, 0, 1, 1], [], []>} : vector<8x64xbf16>, vector<64x64xbf16>, vector<8x64xf32> -> vector<8x64xf32>
    %c0_9 = arith.constant 0 : index
    %c0_10 = arith.constant 0 : index
    %12 = vector.load %arg5[%c0_9, %c0_10] : memref<1x64xf32, #tpu.memory_space<vmem>>, vector<1x64xf32>
    %13 = vector.broadcast %12 : vector<1x64xf32> to vector<8x64xf32>
    %14 = arith.addf %11, %13 : vector<8x64xf32>
    %cst_11 = arith.constant 0.000000e+00 : f32
    %15 = vector.broadcast %cst_11 : f32 to vector<8x64xf32>
    %16 = arith.maximumf %14, %15 : vector<8x64xf32>
    %17 = arith.truncf %16 : vector<8x64xf32> to vector<8x64xbf16>
    %c0_12 = arith.constant 0 : index
    %c0_13 = arith.constant 0 : index
    %18 = vector.load %arg6[%c0_12, %c0_13] : memref<64x32xbf16, #tpu.memory_space<vmem>>, vector<64x32xbf16>
    %cst_14 = arith.constant dense<0.000000e+00> : vector<8x32xf32>
    %19 = tpu.matmul %17, %18, %cst_14 {dimension_numbers = #tpu.dot_dimension_numbers<[1], [0], [0], [1], [0, 0, 1, 1], [], []>} : vector<8x64xbf16>, vector<64x32xbf16>, vector<8x32xf32> -> vector<8x32xf32>
    %c0_15 = arith.constant 0 : index
    %c0_16 = arith.constant 0 : index
    %20 = vector.load %arg7[%c0_15, %c0_16] : memref<1x32xf32, #tpu.memory_space<vmem>>, vector<1x32xf32>
    %21 = vector.broadcast %20 : vector<1x32xf32> to vector<8x32xf32>
    %22 = arith.addf %19, %21 : vector<8x32xf32>
    %cst_17 = arith.constant 0.000000e+00 : f32
    %23 = vector.broadcast %cst_17 : f32 to vector<8x32xf32>
    %24 = arith.maximumf %22, %23 : vector<8x32xf32>
    %c0_18 = arith.constant 0 : index
    %c0_19 = arith.constant 0 : index
    %25 = vector.load %arg8[%c0_18, %c0_19] : memref<1x32xbf16, #tpu.memory_space<vmem>>, vector<1x32xbf16>
    %26 = arith.extf %25 : vector<1x32xbf16> to vector<1x32xf32>
    %27 = vector.broadcast %26 : vector<1x32xf32> to vector<8x32xf32>
    %28 = arith.mulf %24, %27 : vector<8x32xf32>
    %cst_20 = arith.constant dense<0.000000e+00> : vector<8xf32>
    %29 = vector.multi_reduction <add>, %28, %cst_20 [1] : vector<8x32xf32> to vector<8xf32>
    %30 = vector.shape_cast %29 : vector<8xf32> to vector<8x1xf32>
    %c0_21 = arith.constant 0 : index
    %c0_22 = arith.constant 0 : index
    %31 = vector.load %arg9[%c0_21, %c0_22] : memref<1x1xf32, #tpu.memory_space<vmem>>, vector<1x1xf32>
    %32 = vector.broadcast %31 : vector<1x1xf32> to vector<8x1xf32>
    %33 = arith.addf %30, %32 : vector<8x1xf32>
    %c0_23 = arith.constant 0 : index
    %c0_24 = arith.constant 0 : index
    %34 = vector.load %arg10[%c0_23, %c0_24] : memref<8x1xf32, #tpu.memory_space<vmem>>, vector<8x1xf32>
    tpu.vector_store %arg10[%c0_23, %c0_24], %33 {strides = array<i32>} : memref<8x1xf32, #tpu.memory_space<vmem>>, vector<8x1xf32>,
    return
  }
  func.func @transform_0(%arg0: i32) -> (i32, i32) {
    %c0_i32 = arith.constant 0 : i32
    %c0_i32_0 = arith.constant 0 : i32
    return %arg0, %c0_i32 : i32, i32
  }
  func.func @transform_1(%arg0: i32) -> (i32, i32) {
    %c0_i32 = arith.constant 0 : i32
    %c0_i32_0 = arith.constant 0 : i32
    %c0_i32_1 = arith.constant 0 : i32
    return %c0_i32, %c0_i32_0 : i32, i32
  }
  func.func @transform_2(%arg0: i32) -> (i32, i32) {
    %c0_i32 = arith.constant 0 : i32
    %c0_i32_0 = arith.constant 0 : i32
    %c0_i32_1 = arith.constant 0 : i32
    return %c0_i32, %c0_i32_0 : i32, i32
  }
  func.func @transform_3(%arg0: i32) -> (i32, i32) {
    %c0_i32 = arith.constant 0 : i32
    %c0_i32_0 = arith.constant 0 : i32
    %c0_i32_1 = arith.constant 0 : i32
    return %c0_i32, %c0_i32_0 : i32, i32
  }
  func.func @transform_4(%arg0: i32) -> (i32, i32) {
    %c0_i32 = arith.constant 0 : i32
    %c0_i32_0 = arith.constant 0 : i32
    %c0_i32_1 = arith.constant 0 : i32
    return %c0_i32, %c0_i32_0 : i32, i32
  }
  func.func @transform_5(%arg0: i32) -> (i32, i32) {
    %c0_i32 = arith.constant 0 : i32
    %c0_i32_0 = arith.constant 0 : i32
    %c0_i32_1 = arith.constant 0 : i32
    return %c0_i32, %c0_i32_0 : i32, i32
  }
  func.func @transform_6(%arg0: i32) -> (i32, i32) {
    %c0_i32 = arith.constant 0 : i32
    %c0_i32_0 = arith.constant 0 : i32
    %c0_i32_1 = arith.constant 0 : i32
    return %c0_i32, %c0_i32_0 : i32, i32
  }
  func.func @transform_7(%arg0: i32) -> (i32, i32) {
    %c0_i32 = arith.constant 0 : i32
    %c0_i32_0 = arith.constant 0 : i32
    %c0_i32_1 = arith.constant 0 : i32
    return %c0_i32, %c0_i32_0 : i32, i32
  }
  func.func @transform_8(%arg0: i32) -> (i32, i32) {
    %c0_i32 = arith.constant 0 : i32
    %c0_i32_0 = arith.constant 0 : i32
    %c0_i32_1 = arith.constant 0 : i32
    return %c0_i32, %c0_i32_0 : i32, i32
  }
  func.func @transform_9(%arg0: i32) -> (i32, i32) {
    %c0_i32 = arith.constant 0 : i32
    %c0_i32_0 = arith.constant 0 : i32
    return %arg0, %c0_i32 : i32, i32
  }
}

</mosaic_0001>

<llo_original>
// kernel: tpu_custom_call.1
$region0: #{tpu_custom_call.1}
  #allocation0 [shape = 'u32[]', space=smem, size = 0x4, offset = 0x4, fixed_abs, tag = 'smem constant byte address 0x4 - core index']
  #allocation1 [shape = 'u32[144,128]{1,0:T(1,128)}', space=vmem, size = 0x12000, scoped, tag = 'internal scratch']
  #allocation2 [shape = 'f32[1,1]{1,0:T(1,128)S(1)}', space=vmem, size = 0x200, scoped, tag = 'scoped memory for tpu_custom_call.1']
  %s0 = inlined_call_operand.hbm [shape: f32[8,32], index: 0, kind: input, shape index: {}]
  %s1 = inlined_call_operand.vmem [shape: bf16[32,64], index: 1, kind: input, shape index: {}]
  %s2 = inlined_call_operand.vmem [shape: f32[1,64], index: 2, kind: input, shape index: {}]
  %s3 = inlined_call_operand.vmem [shape: bf16[64,64], index: 3, kind: input, shape index: {}]
  %s4 = inlined_call_operand.vmem [shape: f32[1,64], index: 4, kind: input, shape index: {}]
  %s5 = inlined_call_operand.vmem [shape: bf16[64,32], index: 5, kind: input, shape index: {}]
  %s6 = inlined_call_operand.vmem [shape: f32[1,32], index: 6, kind: input, shape index: {}]
  %s7 = inlined_call_operand.vmem [shape: bf16[1,32], index: 7, kind: input, shape index: {}]
  %s8 = inlined_call_operand.<no memory space> [shape: f32[1,1], index: 8, kind: input, shape index: {}]
  %s9 = inlined_call_operand.vmem [shape: f32[8,1], index: 9, kind: output, shape index: {}]
  %s10 = sld [smem:[#allocation0]]
  $region50: #{tpu_custom_call.1} parent=0
    _
  %s12 = ssub.s32 1, %s10
  %s13 = scalar_select 0, %s12, %s10
  %v14 = vstv %s8
  %15 = vst [vmem:[#allocation2] sm:$0x1] %v14
  $region1: #{tpu_custom_call.1} parent=0
    #allocation3 [shape = 'u8[4096]{0}', space=vmem, size = 0x1000, scoped, tag = 'input window, operand 0, single buffered']
    #allocation4 [shape = 's32[1]{0}', space=sflag, size = 0x4, scoped, tag = 'scoped memory for tpu_custom_call.1']
    %16 = vsyncpa [#allocation4], 0
    // Predicated region
    $region2: #{tpu_custom_call.1} parent=1 // pred_check
      _
    $region3: #{tpu_custom_call.1} parent=1 // pred_check_branch
      %18 = sbr.rel (0) target = $region5
    $region4: #{tpu_custom_call.1} parent=1 // pred_region
      %s20 = ssub.s32 128, 128
      %21 = vsyncadd [#allocation4], %s20
      %s23 = sshll.u32 [#allocation3], 4
      %s24 = int_to_ptr.vmem [resolvable:$true] %s23
      %26 = dma.hbm_to_vmem [thread:$0]  %s0, 128, %s24, [#allocation4]
    $region5: #{tpu_custom_call.1} parent=1 // pred_fallthru
      _
    // Predicated region
    $region6: #{tpu_custom_call.1} parent=1 // pred_check
      _
    $region7: #{tpu_custom_call.1} parent=1 // pred_check_branch
      %28 = sbr.rel (0) target = $region9
    $region8: #{tpu_custom_call.1} parent=1 // pred_region
      _
    $region9: #{tpu_custom_call.1} parent=1 // pred_fallthru
      _
    // Predicated region
    $region10: #{tpu_custom_call.1} parent=1 // pred_check
      _
    $region11: #{tpu_custom_call.1} parent=1 // pred_check_branch
      %30 = sbr.rel (0) target = $region13
    $region12: #{tpu_custom_call.1} parent=1 // pred_region
      _
    $region13: #{tpu_custom_call.1} parent=1 // pred_fallthru
      _
    // Predicated region
    $region14: #{tpu_custom_call.1} parent=1 // pred_check
      _
    $region15: #{tpu_custom_call.1} parent=1 // pred_check_branch
      %32 = sbr.rel (0) target = $region17
    $region16: #{tpu_custom_call.1} parent=1 // pred_region
      _
    $region17: #{tpu_custom_call.1} parent=1 // pred_fallthru
      _
    // Predicated region
    $region18: #{tpu_custom_call.1} parent=1 // pred_check
      _
    $region19: #{tpu_custom_call.1} parent=1 // pred_check_branch
      %34 = sbr.rel (0) target = $region21
    $region20: #{tpu_custom_call.1} parent=1 // pred_region
      _
    $region21: #{tpu_custom_call.1} parent=1 // pred_fallthru
      _
    // Predicated region
    $region22: #{tpu_custom_call.1} parent=1 // pred_check
      _
    $region23: #{tpu_custom_call.1} parent=1 // pred_check_branch
      %36 = sbr.rel (0) target = $region25
    $region24: #{tpu_custom_call.1} parent=1 // pred_region
      _
    $region25: #{tpu_custom_call.1} parent=1 // pred_fallthru
      _
    // Predicated region
    $region26: #{tpu_custom_call.1} parent=1 // pred_check
      _
    $region27: #{tpu_custom_call.1} parent=1 // pred_check_branch
      %38 = sbr.rel (0) target = $region29
    $region28: #{tpu_custom_call.1} parent=1 // pred_region
      _
    $region29: #{tpu_custom_call.1} parent=1 // pred_fallthru
      _
    // Predicated region
    $region30: #{tpu_custom_call.1} parent=1 // pred_check
      _
    $region31: #{tpu_custom_call.1} parent=1 // pred_check_branch
      %40 = sbr.rel (0) target = $region33
    $region32: #{tpu_custom_call.1} parent=1 // pred_region
      _
    $region33: #{tpu_custom_call.1} parent=1 // pred_fallthru
      _
    // Predicated region
    $region34: #{tpu_custom_call.1} parent=1 // pred_check
      _
    $region35: #{tpu_custom_call.1} parent=1 // pred_check_branch
      %42 = sbr.rel (0) target = $region37
    $region36: #{tpu_custom_call.1} parent=1 // pred_region
      _
    $region37: #{tpu_custom_call.1} parent=1 // pred_fallthru
      _
    // Predicated region
    $region38: #{tpu_custom_call.1} parent=1 // pred_check
      _
    $region39: #{tpu_custom_call.1} parent=1 // pred_check_branch
      %44 = sbr.rel (0) target = $region41
    $region40: #{tpu_custom_call.1} parent=1 // pred_region
      %45 = dma.done [#allocation4], 128
    $region41: #{tpu_custom_call.1} parent=1 // pred_fallthru
      _
    %v47 = vld [vmem:[#allocation3] sm:$0xff]
    %v48 = vpack.c.bf16 %v47, %v47
    %v49 = vld [vmem:[%s1] sm:$0xf]
    %v50 = vld [vmem:[%s1 + $0x4] sm:$0xf]
    %v51 = vld [vmem:[%s1 + $0x8] sm:$0xf]
    %v52 = vld [vmem:[%s1 + $0xc] sm:$0xf]
    %v53 = vld [vmem:[%s2] sm:$0x1]
    %v55 = vlaneseq
    %v56 = vshrl.u32 %v55, 7
    %v57 = vsub.s32 0, %v56
    %v58 = vrot.slane %v53, %v57
    %v64 = vunpack.c.l.b16 %v49
    %v65 = vunpack.c.l.b16 %v50
    %v66 = vunpack.c.l.b16 %v51
    %v67 = vunpack.c.l.b16 %v52
    %v68 = vpack.c.b16 %v65, %v64
    %v69 = vpack.c.b16 %v67, %v66
    %vm72 = vcmask 261120
    %v74 = vsel %vm72, %v48, 0
    %76 = vmatprep.subr.bf16.mxu0 0
    %77 = vmatpush1.bf16.msra.mxu0 0
    %78 = vmatprep.subr.bf16.mxu0 0
    %79 = vmatpush1.bf16.msra.mxu0 0
    %80 = vmatprep.subr.bf16.mxu0 0
    %81 = vmatpush1.bf16.msra.mxu0 0
    %82 = vmatprep.subr.bf16.mxu0 0
    %83 = vmatpush1.bf16.msra.mxu0 0
    %84 = vmatprep.subr.bf16.mxu0 0
    %85 = vmatpush1.bf16.msra.mxu0 0
    %86 = vmatprep.subr.bf16.mxu0 0
    %87 = vmatpush1.bf16.msra.mxu0 0
    %88 = vmatprep.subr.bf16.mxu0 0
    %89 = vmatpush1.bf16.msra.mxu0 %v69
    %90 = vmatprep.subr.bf16.mxu0 0
    %91 = vmatpush1.bf16.msra.mxu0 %v68
    %92 = vmatprep.subr.bf16.mxu0 0
    %93 = vmatpush2.bf16.msra.mxu0 0
    %94 = vmatprep.subr.bf16.mxu0 0
    %95 = vmatpush2.bf16.msra.mxu0 0
    %96 = vmatprep.subr.bf16.mxu0 0
    %97 = vmatpush2.bf16.msra.mxu0 0
    %98 = vmatprep.subr.bf16.mxu0 0
    %99 = vmatpush2.bf16.msra.mxu0 0
    %100 = vmatprep.subr.bf16.mxu0 0
    %101 = vmatpush2.bf16.msra.mxu0 0
    %102 = vmatprep.subr.bf16.mxu0 0
    %103 = vmatpush2.bf16.msra.mxu0 0
    %104 = vmatprep.subr.bf16.mxu0 0
    %105 = vmatpush2.bf16.msra.mxu0 0
    %106 = vmatprep.subr.bf16.mxu0 0
    %107 = vmatpush2.bf16.msra.mxu0 0
    %108 = vmatprep.mubr.bf16.mxu0 0
    %109 = vmatmul.mubr.bf16.gmra.mxu0 %v74
    %v110 = vpop.f32.mrf.mxu0
    %v111 = vadd.f32 %v58, %v110
    %v112 = vpop.f32.mrf.mxu0
    %v113 = vpop.f32.mrf.mxu0
    %v114 = vpop.f32.mrf.mxu0
    %115 = vdwg.mxu0
    %v116 = vmax.f32 %v111, 0.0
    %v117 = vpack.c.bf16 %v116, %v116
    %v118 = vld [vmem:[%s3] sm:$0xf]
    %v119 = vld [vmem:[%s3 + $0x4] sm:$0xf]
    %v120 = vld [vmem:[%s3 + $0x8] sm:$0xf]
    %v121 = vld [vmem:[%s3 + $0xc] sm:$0xf]
    %v122 = vld [vmem:[%s3 + $0x10] sm:$0xf]
    %v123 = vld [vmem:[%s3 + $0x14] sm:$0xf]
    %v124 = vld [vmem:[%s3 + $0x18] sm:$0xf]
    %v125 = vld [vmem:[%s3 + $0x1c] sm:$0xf]
    %v126 = vld [vmem:[%s4] sm:$0x1]
    %v128 = vlaneseq
    %v129 = vshrl.u32 %v128, 7
    %v130 = vsub.s32 0, %v129
    %v131 = vrot.slane %v126, %v130
    %v141 = vunpack.c.l.b16 %v118
    %v142 = vunpack.c.l.b16 %v119
    %v143 = vunpack.c.l.b16 %v120
    %v144 = vunpack.c.l.b16 %v121
    %v145 = vunpack.c.l.b16 %v122
    %v146 = vunpack.c.l.b16 %v123
    %v147 = vunpack.c.l.b16 %v124
    %v148 = vunpack.c.l.b16 %v125
    %v149 = vpack.c.b16 %v142, %v141
    %v150 = vpack.c.b16 %v144, %v143
    %v151 = vpack.c.b16 %v146, %v145
    %v152 = vpack.c.b16 %v148, %v147
    %vm157 = vcmask 523264
    %v159 = vsel %vm157, %v117, 0
    %161 = vmatprep.subr.bf16.mxu0 0
    %162 = vmatpush1.bf16.msra.mxu0 0
    %163 = vmatprep.subr.bf16.mxu0 0
    %164 = vmatpush1.bf16.msra.mxu0 0
    %165 = vmatprep.subr.bf16.mxu0 0
    %166 = vmatpush1.bf16.msra.mxu0 0
    %167 = vmatprep.subr.bf16.mxu0 0
    %168 = vmatpush1.bf16.msra.mxu0 0
    %169 = vmatprep.subr.bf16.mxu0 0
    %170 = vmatpush1.bf16.msra.mxu0 %v152
    %171 = vmatprep.subr.bf16.mxu0 0
    %172 = vmatpush1.bf16.msra.mxu0 %v151
    %173 = vmatprep.subr.bf16.mxu0 0
    %174 = vmatpush1.bf16.msra.mxu0 %v150
    %175 = vmatprep.subr.bf16.mxu0 0
    %176 = vmatpush1.bf16.msra.mxu0 %v149
    %177 = vmatprep.subr.bf16.mxu0 0
    %178 = vmatpush2.bf16.msra.mxu0 0
    %179 = vmatprep.subr.bf16.mxu0 0
    %180 = vmatpush2.bf16.msra.mxu0 0
    %181 = vmatprep.subr.bf16.mxu0 0
    %182 = vmatpush2.bf16.msra.mxu0 0
    %183 = vmatprep.subr.bf16.mxu0 0
    %184 = vmatpush2.bf16.msra.mxu0 0
    %185 = vmatprep.subr.bf16.mxu0 0
    %186 = vmatpush2.bf16.msra.mxu0 0
    %187 = vmatprep.subr.bf16.mxu0 0
    %188 = vmatpush2.bf16.msra.mxu0 0
    %189 = vmatprep.subr.bf16.mxu0 0
    %190 = vmatpush2.bf16.msra.mxu0 0
    %191 = vmatprep.subr.bf16.mxu0 0
    %192 = vmatpush2.bf16.msra.mxu0 0
    %193 = vmatprep.mubr.bf16.mxu0 0
    %194 = vmatmul.mubr.bf16.gmra.mxu0 %v159
    %v195 = vpop.f32.mrf.mxu0
    %v196 = vadd.f32 %v131, %v195
    %v197 = vpop.f32.mrf.mxu0
    %v198 = vpop.f32.mrf.mxu0
    %v199 = vpop.f32.mrf.mxu0
    %200 = vdwg.mxu0
    %v201 = vmax.f32 %v196, 0.0
    %v202 = vpack.c.bf16 %v201, %v201
    %v203 = vld [vmem:[%s5] sm:$0xf]
    %v204 = vld [vmem:[%s5 + $0x4] sm:$0xf]
    %v205 = vld [vmem:[%s5 + $0x8] sm:$0xf]
    %v206 = vld [vmem:[%s5 + $0xc] sm:$0xf]
    %v207 = vld [vmem:[%s5 + $0x10] sm:$0xf]
    %v208 = vld [vmem:[%s5 + $0x14] sm:$0xf]
    %v209 = vld [vmem:[%s5 + $0x18] sm:$0xf]
    %v210 = vld [vmem:[%s5 + $0x1c] sm:$0xf]
    %v211 = vld [vmem:[%s6] sm:$0x1]
    %v213 = vlaneseq
    %v214 = vshrl.u32 %v213, 7
    %v215 = vsub.s32 0, %v214
    %v216 = vrot.slane %v211, %v215
    %v226 = vunpack.c.l.b16 %v203
    %v227 = vunpack.c.l.b16 %v204
    %v228 = vunpack.c.l.b16 %v205
    %v229 = vunpack.c.l.b16 %v206
    %v230 = vunpack.c.l.b16 %v207
    %v231 = vunpack.c.l.b16 %v208
    %v232 = vunpack.c.l.b16 %v209
    %v233 = vunpack.c.l.b16 %v210
    %v234 = vpack.c.b16 %v227, %v226
    %v235 = vpack.c.b16 %v229, %v228
    %v236 = vpack.c.b16 %v231, %v230
    %v237 = vpack.c.b16 %v233, %v232
    %v243 = vsel %vm157, %v202, 0
    %245 = vmatprep.subr.bf16.mxu0 0
    %246 = vmatpush1.bf16.msra.mxu0 0
    %247 = vmatprep.subr.bf16.mxu0 0
    %248 = vmatpush1.bf16.msra.mxu0 0
    %249 = vmatprep.subr.bf16.mxu0 0
    %250 = vmatpush1.bf16.msra.mxu0 0
    %251 = vmatprep.subr.bf16.mxu0 0
    %252 = vmatpush1.bf16.msra.mxu0 0
    %253 = vmatprep.subr.bf16.mxu0 0
    %254 = vmatpush1.bf16.msra.mxu0 %v237
    %255 = vmatprep.subr.bf16.mxu0 0
    %256 = vmatpush1.bf16.msra.mxu0 %v236
    %257 = vmatprep.subr.bf16.mxu0 0
    %258 = vmatpush1.bf16.msra.mxu0 %v235
    %259 = vmatprep.subr.bf16.mxu0 0
    %260 = vmatpush1.bf16.msra.mxu0 %v234
    %261 = vmatprep.subr.bf16.mxu0 0
    %262 = vmatpush2.bf16.msra.mxu0 0
    %263 = vmatprep.subr.bf16.mxu0 0
    %264 = vmatpush2.bf16.msra.mxu0 0
    %265 = vmatprep.subr.bf16.mxu0 0
    %266 = vmatpush2.bf16.msra.mxu0 0
    %267 = vmatprep.subr.bf16.mxu0 0
    %268 = vmatpush2.bf16.msra.mxu0 0
    %269 = vmatprep.subr.bf16.mxu0 0
    %270 = vmatpush2.bf16.msra.mxu0 0
    %271 = vmatprep.subr.bf16.mxu0 0
    %272 = vmatpush2.bf16.msra.mxu0 0
    %273 = vmatprep.subr.bf16.mxu0 0
    %274 = vmatpush2.bf16.msra.mxu0 0
    %275 = vmatprep.subr.bf16.mxu0 0
    %276 = vmatpush2.bf16.msra.mxu0 0
    %277 = vmatprep.mubr.bf16.mxu0 0
    %278 = vmatmul.mubr.bf16.gmra.mxu0 %v243
    %v279 = vpop.f32.mrf.mxu0
    %v280 = vadd.f32 %v216, %v279
    %v281 = vpop.f32.mrf.mxu0
    %v282 = vpop.f32.mrf.mxu0
    %v283 = vpop.f32.mrf.mxu0
    %284 = vdwg.mxu0
    %v285 = vmax.f32 %v280, 0.0
    %v286 = vld [vmem:[%s7] sm:$0x1]
    %v287 = vunpack.c.l.bf16 %v286
    %v288 = vlaneseq
    %v289 = vshrl.u32 %v288, 7
    %v290 = vsub.s32 0, %v289
    %v291 = vrot.slane %v287, %v290
    %v292 = vmul.f32 %v285, %v291
    %v293 = vsel %vm72, %v292, 0.0
    %294 = vadd.xlane.f32.xlu0 %v293
    %v295 = vpop.xlane.xlu0 %294
    %v296 = vld [vmem:[#allocation2] sm:$0x1]
    %v298 = vlaneseq
    %v299 = vshrl.u32 %v298, 7
    %v300 = vsub.s32 0, %v299
    %v301 = vrot.slane %v296, %v300
    %v303 = vadd.f32 %v295, %v301
    %vm304 = vcmask 7168
    %305 = vst.msk [vmem:[%s9] sm:$0xff] %vm304, %v303
    // Predicated region
    $region42: #{tpu_custom_call.1} parent=1 // pred_check
      _
    $region43: #{tpu_custom_call.1} parent=1 // pred_check_branch
      %307 = sbr.rel (0) target = $region45
    $region44: #{tpu_custom_call.1} parent=1 // pred_region
      _
    $region45: #{tpu_custom_call.1} parent=1 // pred_fallthru
      _
    // Predicated region
    $region46: #{tpu_custom_call.1} parent=1 // pred_check
      _
    $region47: #{tpu_custom_call.1} parent=1 // pred_check_branch
      %309 = sbr.rel (0) target = $region49
    $region48: #{tpu_custom_call.1} parent=1 // pred_region
      _
    $region49: #{tpu_custom_call.1} parent=1 // pred_fallthru
      _
    %310 = vsyncpa [#allocation4], 1

</llo_original>
